<compile_context>
chip_gen: v7x
topology: tpu7x:2x2x1
jax: 0.10.0
libtpu: 0.0.40
codegen_flags: <defaults>
</compile_context>

<pallas_src>
import functools

import jax
import jax.numpy as jnp
import numpy as np
from jax.experimental import pallas as pl
from jax.experimental.pallas import tpu as pltpu


def _waveblock_kernel(cin, d, x_ref, mask_ref,
                      wpre_ref, bpre_ref,
                      wg0_ref, wg1_ref, bg_ref,
                      wpost_ref, bpost_ref,
                      out_x_ref, out_z_ref):
    x = x_ref[...]                                    # (Cin, T): channels x lanes
    T = x.shape[-1]

    # pre_process (1x1 conv) + ReLU -> h: (16, T)
    if cin == 1:
        # K=1 "matmul" is an outer product; keep it on the VPU.
        h = wpre_ref[...] * x + bpre_ref[...]         # (16,1)*(1,T) -> (16,T)
    else:
        h = jnp.dot(wpre_ref[...], x,
                    preferred_element_type=jnp.float32) + bpre_ref[...]
    h = jnp.maximum(h, 0.0)

    # Second tap of the (1,2) dilated conv: h_shift[c, l] = h[c, l+d] within
    # each W-row, zero where the tap falls into ZeroPad2d((0, d, 0, 0)) padding.
    # Mask-multiply is safe: h is post-ReLU and finite.
    shift = (T - (d % T)) % T
    h_shift = pltpu.roll(h, shift=shift, axis=1) * mask_ref[...]

    # gating conv (1,2) dilated: two accumulating dots, no sublane concatenate.
    x_g = (jnp.dot(wg0_ref[...], h, preferred_element_type=jnp.float32)
           + jnp.dot(wg1_ref[...], h_shift, preferred_element_type=jnp.float32)
           + bg_ref[...])                             # (32, T)

    # NOTE: the original forward computes tanh(filter(x)) * sigmoid(gating(x))
    # and immediately overwrites it, so the `filter` branch is dead code and is
    # intentionally not computed (forward outputs are unaffected).

    # post_process (1x1 conv) applied to x_g (matches the original code) + ReLU
    z = jnp.dot(wpost_ref[...], x_g,
                preferred_element_type=jnp.float32) + bpost_ref[...]   # (16, T)
    z = jnp.maximum(z, 0.0)

    out_x_ref[...] = (h + z).astype(out_x_ref.dtype)  # x += z (x = relu'd pre_process out)
    out_z_ref[...] = z.astype(out_z_ref.dtype)


def _choose_rows(total_rows, w, max_lanes):
    """Largest divisor k of total_rows with k*W <= max_lanes (tiles stay W-aligned)."""
    best = 1
    for k in range(1, total_rows + 1):
        if total_rows % k == 0 and k * w <= max_lanes:
            best = k
    return best


def waveblock_pallas(x_nchw, params, dilation_rate, *, max_lane_tile=4096):
    """Returns (x_out, z_out) in NCHW, matching WaveBlock.forward."""
    wpre, bpre, wf, bf, wg, bg, wpost, bpost = params   # wf/bf feed dead code; unused
    N, Cin, H, W = x_nchw.shape
    d = int(dilation_rate)
    L = H * W

    # Tiny-problem path: fold the batch into the lane axis when one image is
    # lane-starved (< 128 lanes).  The small transposes this needs are
    # negligible exactly in that regime; for L >= 128 we keep the transpose-free
    # per-batch presentation.
    fold = (L < 128) and (N > 1)
    if fold:
        rows = N * H
        if Cin == 1:
            x3 = x_nchw.reshape(1, 1, N * L)                              # free reshape
        else:
            x3 = jnp.transpose(x_nchw.reshape(N, Cin, L), (1, 0, 2)).reshape(1, Cin, N * L)
        NB, Lb = 1, N * L
    else:
        rows = H
        x3 = x_nchw.reshape(N, Cin, L)                                     # free reshape
        NB, Lb = N, L

    k = _choose_rows(rows, W, max_lane_tile)
    T = k * W                       # lane tile: W-aligned, capped by max_lane_tile
    n_tiles = rows // k

    # Weights in (Cout, Cin) matmul form; the two dilated taps stay separate.
    wpre_km = wpre[:, :, 0, 0]                  # (16, Cin)
    wg0 = wg[:, :, 0, 0]                        # (32, 16) tap 0
    wg1 = wg[:, :, 0, 1]                        # (32, 16) tap 1 (dilated)
    wpost_km = wpost[:, :, 0, 0]                # (16, 32)
    bpre_c = bpre.reshape(-1, 1)
    bg_c = bg.reshape(-1, 1)
    bpost_c = bpost.reshape(-1, 1)

    # Lane mask reproducing ZeroPad2d((0, d, 0, 0)).  It is periodic in W and
    # tiles are W-aligned, so ONE (1, T) block serves every grid step and stays
    # resident in VMEM (index_map returns block 0 for all steps).
    lane = np.arange(T)
    mask = jnp.asarray(((lane % W) < max(W - d, 0)).astype(np.float32)).reshape(1, T)

    def resident(a):
        nd = a.ndim
        return pl.BlockSpec(a.shape, lambda n, t, _nd=nd: (0,) * _nd)

    kernel = functools.partial(_waveblock_kernel, Cin, d)

    out_x3, out_z3 = pl.pallas_call(
        kernel,
        grid=(NB, n_tiles),
        in_specs=[
            pl.BlockSpec((None, Cin, T), lambda n, t: (n, 0, t)),   # x tile
            resident(mask),
            resident(wpre_km), resident(bpre_c),
            resident(wg0), resident(wg1), resident(bg_c),
            resident(wpost_km), resident(bpost_c),
        ],
        out_specs=[
            pl.BlockSpec((None, 16, T), lambda n, t: (n, 0, t)),
            pl.BlockSpec((None, 16, T), lambda n, t: (n, 0, t)),
        ],
        out_shape=[
            jax.ShapeDtypeStruct((NB, 16, Lb), jnp.float32),
            jax.ShapeDtypeStruct((NB, 16, Lb), jnp.float32),
        ],
        compiler_params=pltpu.CompilerParams(
            dimension_semantics=("parallel", "parallel")),
    )(x3, mask, wpre_km, bpre_c, wg0, wg1, bg_c, wpost_km, bpost_c)

    if fold:
        out_x = jnp.transpose(out_x3.reshape(16, N, L), (1, 0, 2)).reshape(N, 16, H, W)
        out_z = jnp.transpose(out_z3.reshape(16, N, L), (1, 0, 2)).reshape(N, 16, H, W)
    else:
        out_x = out_x3.reshape(N, 16, H, W)
        out_z = out_z3.reshape(N, 16, H, W)
    return out_x, out_z


def waveblock_ref(x_nchw, params, dilation_rate):
    """Pure-JAX reference using conv_general_dilated (mirrors the PyTorch ops)."""
    wpre, bpre, wf, bf, wg, bg, wpost, bpost = params
    d = int(dilation_rate)

    def conv(x, w, b, dil, pad_r):
        y = jax.lax.conv_general_dilated(
            x, w, window_strides=(1, 1),
            padding=((0, 0), (0, pad_r)),
            rhs_dilation=(1, dil),
            dimension_numbers=('NCHW', 'OIHW', 'NCHW'),
            precision=jax.lax.Precision.HIGHEST)
        return y + b[None, :, None, None]

    h = jax.nn.relu(conv(x_nchw, wpre, bpre, 1, 0))
    # The filter branch (tanh*sigmoid) is dead code in the original forward.
    x_g = conv(h, wg, bg, d, d)
    z = jax.nn.relu(conv(x_g, wpost, bpost, 1, 0))
    return h + z, z


def make_params(key, cin):
    """Deterministic synthetic params with PyTorch Conv2d-style shapes/ranges."""
    ks = jax.random.split(key, 8)

    def u(k, shape, fan_in):
        bound = 1.0 / np.sqrt(fan_in)
        return jax.random.uniform(k, shape, jnp.float32, -bound, bound)

    wpre = u(ks[0], (16, cin, 1, 1), cin * 1 * 1)
    bpre = u(ks[1], (16,), cin * 1 * 1)
    wf = u(ks[2], (32, 16, 1, 2), 16 * 1 * 2)
    bf = u(ks[3], (32,), 16 * 1 * 2)
    wg = u(ks[4], (32, 16, 1, 2), 16 * 1 * 2)
    bg = u(ks[5], (32,), 16 * 1 * 2)
    wpost = u(ks[6], (16, 32, 1, 1), 32 * 1 * 1)
    bpost = u(ks[7], (16,), 32 * 1 * 1)
    return (wpre, bpre, wf, bf, wg, bg, wpost, bpost)


if __name__ == "__main__":
    root = jax.random.PRNGKey(0)
    k_a, k_b, k_c, k_pa, k_pb, k_pc = jax.random.split(root, 6)

    configs = [
        # (initial, dilation_rate, input_shape NCHW, data key, param key)
        (True, 1, (2, 1, 4, 16), k_a, k_pa),      # tiny: batch folded into lanes
        (False, 2, (2, 16, 4, 16), k_b, k_pb),    # tiny: batch folded into lanes
        (False, 4, (2, 16, 16, 512), k_c, k_pc),  # larger: W-aligned L-tiling, 2x2 grid
    ]

    for initial, d, shape, kx, kp in configs:
        cin = 1 if initial else 16
        x = jax.random.normal(kx, shape, jnp.float32)
        params = make_params(kp, cin)

        out_x, out_z = waveblock_pallas(x, params, d)
        jax.block_until_ready((out_x, out_z))

        ref_x, ref_z = waveblock_ref(x, params, d)
        np.testing.assert_allclose(np.asarray(out_x), np.asarray(ref_x), rtol=1e-4, atol=1e-4)
        np.testing.assert_allclose(np.asarray(out_z), np.asarray(ref_z), rtol=1e-4, atol=1e-4)

    print("KERNEL_OK")
</pallas_src>

<mosaic_0001>
module attributes {stable_mosaic.version = 11 : i64} {
  func.func @_waveblock_kernel(%arg0: i32, %arg1: i32, %arg2: memref<1x1x128xf32, #tpu.memory_space<vmem>>, %arg3: memref<1x128xf32, #tpu.memory_space<vmem>>, %arg4: memref<16x1xf32, #tpu.memory_space<vmem>>, %arg5: memref<16x1xf32, #tpu.memory_space<vmem>>, %arg6: memref<32x16xf32, #tpu.memory_space<vmem>>, %arg7: memref<32x16xf32, #tpu.memory_space<vmem>>, %arg8: memref<32x1xf32, #tpu.memory_space<vmem>>, %arg9: memref<16x32xf32, #tpu.memory_space<vmem>>, %arg10: memref<16x1xf32, #tpu.memory_space<vmem>>, %arg11: memref<1x16x128xf32, #tpu.memory_space<vmem>>, %arg12: memref<1x16x128xf32, #tpu.memory_space<vmem>>) attributes {dimension_semantics = [#tpu.dimension_semantics<parallel>, #tpu.dimension_semantics<parallel>], iteration_bounds = array<i64: 1, 1>, scalar_prefetch = 0 : i64, scratch_operands = 0 : i64, tpu.core_type = #tpu.core_type<tc>, window_params = [{transform_indices = @transform_0, window_bounds = array<i64: 1, 1, 128>}, {pipeline_mode = #tpu.pipeline_mode<synchronous>, transform_indices = @transform_1, window_bounds = array<i64: 1, 128>}, {pipeline_mode = #tpu.pipeline_mode<synchronous>, transform_indices = @transform_2, window_bounds = array<i64: 16, 1>}, {pipeline_mode = #tpu.pipeline_mode<synchronous>, transform_indices = @transform_3, window_bounds = array<i64: 16, 1>}, {pipeline_mode = #tpu.pipeline_mode<synchronous>, transform_indices = @transform_4, window_bounds = array<i64: 32, 16>}, {pipeline_mode = #tpu.pipeline_mode<synchronous>, transform_indices = @transform_5, window_bounds = array<i64: 32, 16>}, {pipeline_mode = #tpu.pipeline_mode<synchronous>, transform_indices = @transform_6, window_bounds = array<i64: 32, 1>}, {pipeline_mode = #tpu.pipeline_mode<synchronous>, transform_indices = @transform_7, window_bounds = array<i64: 16, 32>}, {pipeline_mode = #tpu.pipeline_mode<synchronous>, transform_indices = @transform_8, window_bounds = array<i64: 16, 1>}, {transform_indices = @transform_9, window_bounds = array<i64: 1, 16, 128>}, {transform_indices = @transform_10, window_bounds = array<i64: 1, 16, 128>}]} {
    %c0 = arith.constant 0 : index
    %c0_0 = arith.constant 0 : index
    %c0_1 = arith.constant 0 : index
    %0 = vector.load %arg2[%c0, %c0_0, %c0_1] : memref<1x1x128xf32, #tpu.memory_space<vmem>>, vector<1x1x128xf32>
    %1 = vector.shape_cast %0 : vector<1x1x128xf32> to vector<1x128xf32>
    %c0_2 = arith.constant 0 : index
    %c0_3 = arith.constant 0 : index
    %2 = vector.load %arg4[%c0_2, %c0_3] : memref<16x1xf32, #tpu.memory_space<vmem>>, vector<16x1xf32>
    %3 = vector.broadcast %2 : vector<16x1xf32> to vector<16x128xf32>
    %4 = vector.broadcast %1 : vector<1x128xf32> to vector<16x128xf32>
    %5 = arith.mulf %3, %4 : vector<16x128xf32>
    %c0_4 = arith.constant 0 : index
    %c0_5 = arith.constant 0 : index
    %6 = vector.load %arg5[%c0_4, %c0_5] : memref<16x1xf32, #tpu.memory_space<vmem>>, vector<16x1xf32>
    %7 = vector.broadcast %6 : vector<16x1xf32> to vector<16x128xf32>
    %8 = arith.addf %5, %7 : vector<16x128xf32>
    %cst = arith.constant 0.000000e+00 : f32
    %9 = vector.broadcast %cst : f32 to vector<16x128xf32>
    %10 = arith.maximumf %8, %9 : vector<16x128xf32>
    %c127_i32 = arith.constant 127 : i32
    %11 = tpu.dynamic_rotate %10 by %c127_i32 dim 1 : vector<16x128xf32>, i32 -> vector<16x128xf32>
    %c0_6 = arith.constant 0 : index
    %c0_7 = arith.constant 0 : index
    %12 = vector.load %arg3[%c0_6, %c0_7] : memref<1x128xf32, #tpu.memory_space<vmem>>, vector<1x128xf32>
    %13 = vector.broadcast %12 : vector<1x128xf32> to vector<16x128xf32>
    %14 = arith.mulf %11, %13 : vector<16x128xf32>
    %c0_8 = arith.constant 0 : index
    %c0_9 = arith.constant 0 : index
    %15 = vector.load %arg6[%c0_8, %c0_9] : memref<32x16xf32, #tpu.memory_space<vmem>>, vector<32x16xf32>
    %cst_10 = arith.constant dense<0.000000e+00> : vector<32x128xf32>
    %16 = tpu.matmul %15, %10, %cst_10 {dimension_numbers = #tpu.dot_dimension_numbers<[1], [0], [0], [1], [0, 0, 1, 1], [], []>} : vector<32x16xf32>, vector<16x128xf32>, vector<32x128xf32> -> vector<32x128xf32>
    %c0_11 = arith.constant 0 : index
    %c0_12 = arith.constant 0 : index
    %17 = vector.load %arg7[%c0_11, %c0_12] : memref<32x16xf32, #tpu.memory_space<vmem>>, vector<32x16xf32>
    %cst_13 = arith.constant dense<0.000000e+00> : vector<32x128xf32>
    %18 = tpu.matmul %17, %14, %cst_13 {dimension_numbers = #tpu.dot_dimension_numbers<[1], [0], [0], [1], [0, 0, 1, 1], [], []>} : vector<32x16xf32>, vector<16x128xf32>, vector<32x128xf32> -> vector<32x128xf32>
    %19 = arith.addf %16, %18 : vector<32x128xf32>
    %c0_14 = arith.constant 0 : index
    %c0_15 = arith.constant 0 : index
    %20 = vector.load %arg8[%c0_14, %c0_15] : memref<32x1xf32, #tpu.memory_space<vmem>>, vector<32x1xf32>
    %21 = vector.broadcast %20 : vector<32x1xf32> to vector<32x128xf32>
    %22 = arith.addf %19, %21 : vector<32x128xf32>
    %c0_16 = arith.constant 0 : index
    %c0_17 = arith.constant 0 : index
    %23 = vector.load %arg9[%c0_16, %c0_17] : memref<16x32xf32, #tpu.memory_space<vmem>>, vector<16x32xf32>
    %cst_18 = arith.constant dense<0.000000e+00> : vector<16x128xf32>
    %24 = tpu.matmul %23, %22, %cst_18 {dimension_numbers = #tpu.dot_dimension_numbers<[1], [0], [0], [1], [0, 0, 1, 1], [], []>} : vector<16x32xf32>, vector<32x128xf32>, vector<16x128xf32> -> vector<16x128xf32>
    %c0_19 = arith.constant 0 : index
    %c0_20 = arith.constant 0 : index
    %25 = vector.load %arg10[%c0_19, %c0_20] : memref<16x1xf32, #tpu.memory_space<vmem>>, vector<16x1xf32>
    %26 = vector.broadcast %25 : vector<16x1xf32> to vector<16x128xf32>
    %27 = arith.addf %24, %26 : vector<16x128xf32>
    %cst_21 = arith.constant 0.000000e+00 : f32
    %28 = vector.broadcast %cst_21 : f32 to vector<16x128xf32>
    %29 = arith.maximumf %27, %28 : vector<16x128xf32>
    %30 = arith.addf %10, %29 : vector<16x128xf32>
    %c0_22 = arith.constant 0 : index
    %c0_23 = arith.constant 0 : index
    %c0_24 = arith.constant 0 : index
    %31 = vector.load %arg11[%c0_22, %c0_23, %c0_24] : memref<1x16x128xf32, #tpu.memory_space<vmem>>, vector<1x16x128xf32>
    %32 = vector.shape_cast %31 : vector<1x16x128xf32> to vector<16x128xf32>
    %33 = vector.shape_cast %30 : vector<16x128xf32> to vector<1x16x128xf32>
    tpu.vector_store %arg11[%c0_22, %c0_23, %c0_24], %33 {strides = array<i32>} : memref<1x16x128xf32, #tpu.memory_space<vmem>>, vector<1x16x128xf32>,
    %c0_25 = arith.constant 0 : index
    %c0_26 = arith.constant 0 : index
    %c0_27 = arith.constant 0 : index
    %34 = vector.load %arg12[%c0_25, %c0_26, %c0_27] : memref<1x16x128xf32, #tpu.memory_space<vmem>>, vector<1x16x128xf32>
    %35 = vector.shape_cast %34 : vector<1x16x128xf32> to vector<16x128xf32>
    %36 = vector.shape_cast %29 : vector<16x128xf32> to vector<1x16x128xf32>
    tpu.vector_store %arg12[%c0_25, %c0_26, %c0_27], %36 {strides = array<i32>} : memref<1x16x128xf32, #tpu.memory_space<vmem>>, vector<1x16x128xf32>,
    return
  }
  func.func @transform_0(%arg0: i32, %arg1: i32) -> (i32, i32, i32) {
    %c0_i32 = arith.constant 0 : i32
    %c0_i32_0 = arith.constant 0 : i32
    return %arg0, %c0_i32, %arg1 : i32, i32, i32
  }
  func.func @transform_1(%arg0: i32, %arg1: i32) -> (i32, i32) {
    %c0_i32 = arith.constant 0 : i32
    %c0_i32_0 = arith.constant 0 : i32
    %c0_i32_1 = arith.constant 0 : i32
    return %c0_i32, %c0_i32_0 : i32, i32
  }
  func.func @transform_2(%arg0: i32, %arg1: i32) -> (i32, i32) {
    %c0_i32 = arith.constant 0 : i32
    %c0_i32_0 = arith.constant 0 : i32
    %c0_i32_1 = arith.constant 0 : i32
    return %c0_i32, %c0_i32_0 : i32, i32
  }
  func.func @transform_3(%arg0: i32, %arg1: i32) -> (i32, i32) {
    %c0_i32 = arith.constant 0 : i32
    %c0_i32_0 = arith.constant 0 : i32
    %c0_i32_1 = arith.constant 0 : i32
    return %c0_i32, %c0_i32_0 : i32, i32
  }
  func.func @transform_4(%arg0: i32, %arg1: i32) -> (i32, i32) {
    %c0_i32 = arith.constant 0 : i32
    %c0_i32_0 = arith.constant 0 : i32
    %c0_i32_1 = arith.constant 0 : i32
    return %c0_i32, %c0_i32_0 : i32, i32
  }
  func.func @transform_5(%arg0: i32, %arg1: i32) -> (i32, i32) {
    %c0_i32 = arith.constant 0 : i32
    %c0_i32_0 = arith.constant 0 : i32
    %c0_i32_1 = arith.constant 0 : i32
    return %c0_i32, %c0_i32_0 : i32, i32
  }
  func.func @transform_6(%arg0: i32, %arg1: i32) -> (i32, i32) {
    %c0_i32 = arith.constant 0 : i32
    %c0_i32_0 = arith.constant 0 : i32
    %c0_i32_1 = arith.constant 0 : i32
    return %c0_i32, %c0_i32_0 : i32, i32
  }
  func.func @transform_7(%arg0: i32, %arg1: i32) -> (i32, i32) {
    %c0_i32 = arith.constant 0 : i32
    %c0_i32_0 = arith.constant 0 : i32
    %c0_i32_1 = arith.constant 0 : i32
    return %c0_i32, %c0_i32_0 : i32, i32
  }
  func.func @transform_8(%arg0: i32, %arg1: i32) -> (i32, i32) {
    %c0_i32 = arith.constant 0 : i32
    %c0_i32_0 = arith.constant 0 : i32
    %c0_i32_1 = arith.constant 0 : i32
    return %c0_i32, %c0_i32_0 : i32, i32
  }
  func.func @transform_9(%arg0: i32, %arg1: i32) -> (i32, i32, i32) {
    %c0_i32 = arith.constant 0 : i32
    %c0_i32_0 = arith.constant 0 : i32
    return %arg0, %c0_i32, %arg1 : i32, i32, i32
  }
  func.func @transform_10(%arg0: i32, %arg1: i32) -> (i32, i32, i32) {
    %c0_i32 = arith.constant 0 : i32
    %c0_i32_0 = arith.constant 0 : i32
    return %arg0, %c0_i32, %arg1 : i32, i32, i32
  }
}

</mosaic_0001>

<llo_original>
// kernel: tpu_custom_call.1
$region0: #{tpu_custom_call.1}
  #allocation0 [shape = 'u32[]', space=smem, size = 0x4, offset = 0x4, fixed_abs, tag = 'smem constant byte address 0x4 - core index']
  #allocation1 [shape = 'u32[144,128]{1,0:T(1,128)}', space=vmem, size = 0x12000, scoped, tag = 'internal scratch']
  %s0 = inlined_call_operand.vmem [shape: f32[1,1,128], index: 0, kind: input, shape index: {}]
  %s1 = inlined_call_operand.vmem [shape: f32[1,128], index: 1, kind: input, shape index: {}]
  %s2 = inlined_call_operand.vmem [shape: f32[16,1], index: 2, kind: input, shape index: {}]
  %s3 = inlined_call_operand.vmem [shape: f32[16,1], index: 3, kind: input, shape index: {}]
  %s4 = inlined_call_operand.vmem [shape: f32[32,16], index: 4, kind: input, shape index: {}]
  %s5 = inlined_call_operand.vmem [shape: f32[32,16], index: 5, kind: input, shape index: {}]
  %s6 = inlined_call_operand.vmem [shape: f32[32,1], index: 6, kind: input, shape index: {}]
  %s7 = inlined_call_operand.vmem [shape: f32[16,32], index: 7, kind: input, shape index: {}]
  %s8 = inlined_call_operand.vmem [shape: f32[16,1], index: 8, kind: input, shape index: {}]
  %s9 = inlined_call_operand.hbm [shape: f32[1,16,128], index: 9, kind: output, shape index: {0}]
  %s10 = inlined_call_operand.hbm [shape: f32[1,16,128], index: 10, kind: output, shape index: {1}]
  %11 = xla_tuple %s9, %s10
  %s12 = sld [smem:[#allocation0]]
  $region54: #{tpu_custom_call.1} parent=0
    _
  %s14 = ssub.s32 1, %s12
  %s15 = scalar_select 0, %s14, %s12
  $region1: #{tpu_custom_call.1} parent=0
    #allocation2 [shape = 'u8[8192]{0}', space=vmem, size = 0x2000, scoped, tag = 'output window, operand 0, single buffered']
    #allocation3 [shape = 's32[1]{0}', space=sflag, size = 0x4, scoped, tag = 'scoped memory for tpu_custom_call.1']
    #allocation4 [shape = 'u8[8192]{0}', space=vmem, size = 0x2000, scoped, tag = 'output window, operand 1, single buffered']
    #allocation5 [shape = 's32[1]{0}', space=sflag, size = 0x4, scoped, tag = 'scoped memory for tpu_custom_call.1']
    %16 = vsyncpa [#allocation3], 0
    %17 = vsyncpa [#allocation5], 0
    // Predicated region
    $region2: #{tpu_custom_call.1} parent=1 // pred_check
      _
    $region3: #{tpu_custom_call.1} parent=1 // pred_check_branch
      %19 = sbr.rel (0) target = $region5
    $region4: #{tpu_custom_call.1} parent=1 // pred_region
      _
    $region5: #{tpu_custom_call.1} parent=1 // pred_fallthru
      _
    // Predicated region
    $region6: #{tpu_custom_call.1} parent=1 // pred_check
      _
    $region7: #{tpu_custom_call.1} parent=1 // pred_check_branch
      %21 = sbr.rel (0) target = $region9
    $region8: #{tpu_custom_call.1} parent=1 // pred_region
      _
    $region9: #{tpu_custom_call.1} parent=1 // pred_fallthru
      _
    // Predicated region
    $region10: #{tpu_custom_call.1} parent=1 // pred_check
      _
    $region11: #{tpu_custom_call.1} parent=1 // pred_check_branch
      %23 = sbr.rel (0) target = $region13
    $region12: #{tpu_custom_call.1} parent=1 // pred_region
      _
    $region13: #{tpu_custom_call.1} parent=1 // pred_fallthru
      _
    // Predicated region
    $region14: #{tpu_custom_call.1} parent=1 // pred_check
      _
    $region15: #{tpu_custom_call.1} parent=1 // pred_check_branch
      %25 = sbr.rel (0) target = $region17
    $region16: #{tpu_custom_call.1} parent=1 // pred_region
      _
    $region17: #{tpu_custom_call.1} parent=1 // pred_fallthru
      _
    // Predicated region
    $region18: #{tpu_custom_call.1} parent=1 // pred_check
      _
    $region19: #{tpu_custom_call.1} parent=1 // pred_check_branch
      %27 = sbr.rel (0) target = $region21
    $region20: #{tpu_custom_call.1} parent=1 // pred_region
      _
    $region21: #{tpu_custom_call.1} parent=1 // pred_fallthru
      _
    // Predicated region
    $region22: #{tpu_custom_call.1} parent=1 // pred_check
      _
    $region23: #{tpu_custom_call.1} parent=1 // pred_check_branch
      %29 = sbr.rel (0) target = $region25
    $region24: #{tpu_custom_call.1} parent=1 // pred_region
      _
    $region25: #{tpu_custom_call.1} parent=1 // pred_fallthru
      _
    // Predicated region
    $region26: #{tpu_custom_call.1} parent=1 // pred_check
      _
    $region27: #{tpu_custom_call.1} parent=1 // pred_check_branch
      %31 = sbr.rel (0) target = $region29
    $region28: #{tpu_custom_call.1} parent=1 // pred_region
      _
    $region29: #{tpu_custom_call.1} parent=1 // pred_fallthru
      _
    // Predicated region
    $region30: #{tpu_custom_call.1} parent=1 // pred_check
      _
    $region31: #{tpu_custom_call.1} parent=1 // pred_check_branch
      %33 = sbr.rel (0) target = $region33
    $region32: #{tpu_custom_call.1} parent=1 // pred_region
      _
    $region33: #{tpu_custom_call.1} parent=1 // pred_fallthru
      _
    // Predicated region
    $region34: #{tpu_custom_call.1} parent=1 // pred_check
      _
    $region35: #{tpu_custom_call.1} parent=1 // pred_check_branch
      %35 = sbr.rel (0) target = $region37
    $region36: #{tpu_custom_call.1} parent=1 // pred_region
      _
    $region37: #{tpu_custom_call.1} parent=1 // pred_fallthru
      _
    %v36 = vld [vmem:[%s0] sm:$0x1]
    %v37 = vld [vmem:[%s2] sm:$0xff]
    %v38 = vld [vmem:[%s2 + $0x8] sm:$0xff]
    %40 = vset.pattern.permute.xlu0 0
    %41 = vperm.xlu0 %40, %v37
    %v42 = vpop.permute.xlu0 %41
    %45 = vset.pattern.permute.xlu0 0
    %46 = vperm.xlu0 %45, %v38
    %v47 = vpop.permute.xlu0 %46
    %v50 = vlaneseq
    %v51 = vshrl.u32 %v50, 7
    %v52 = vsub.s32 0, %v51
    %v53 = vrot.slane %v36, %v52
    %v55 = vmul.f32 %v42, %v53
    %v56 = vmul.f32 %v47, %v53
    %v57 = vld [vmem:[%s3] sm:$0xff]
    %v58 = vld [vmem:[%s3 + $0x8] sm:$0xff]
    %60 = vset.pattern.permute.xlu0 0
    %61 = vperm.xlu0 %60, %v57
    %v62 = vpop.permute.xlu0 %61
    %65 = vset.pattern.permute.xlu0 0
    %66 = vperm.xlu0 %65, %v58
    %v67 = vpop.permute.xlu0 %66
    %v69 = vadd.f32 %v55, %v62
    %v70 = vadd.f32 %v56, %v67
    %v71 = vmax.f32 %v69, 0.0
    %v72 = vmax.f32 %v70, 0.0
    %73 = vrot.lane.b32.xlu0 %v71, 127
    %v74 = vpop.permute.xlu0 %73
    %75 = vrot.lane.b32.xlu0 %v72, 127
    %v76 = vpop.permute.xlu0 %75
    %v77 = vld [vmem:[%s1] sm:$0x1]
    %v79 = vlaneseq
    %v80 = vshrl.u32 %v79, 7
    %v81 = vsub.s32 0, %v80
    %v82 = vrot.slane %v77, %v81
    %v84 = vmul.f32 %v74, %v82
    %v85 = vmul.f32 %v76, %v82
    %v86 = vld [vmem:[%s4] sm:$0xff]
    %v87 = vld [vmem:[%s4 + $0x8] sm:$0xff]
    %v88 = vld [vmem:[%s4 + $0x10] sm:$0xff]
    %v89 = vld [vmem:[%s4 + $0x18] sm:$0xff]
    %v90 = vld [vmem:[%s5] sm:$0xff]
    %v91 = vld [vmem:[%s5 + $0x8] sm:$0xff]
    %v92 = vld [vmem:[%s5 + $0x10] sm:$0xff]
    %v93 = vld [vmem:[%s5 + $0x18] sm:$0xff]
    %vm94 = vcmask 130048
    %v96 = vsel %vm94, %v90, 0
    %v99 = vsel %vm94, %v91, 0
    %v102 = vsel %vm94, %v92, 0
    %v105 = vsel %vm94, %v93, 0
    %107 = vmatprep.subr.mxu0 0.0
    %108 = vmatpush1.msra.mxu0 %v84
    %109 = vmatprep.subr.mxu0 0.0
    %110 = vmatpush1.msra.mxu0 %v85
    %111 = vmatprep.subr.mxu0 0.0
    %112 = vmatpush1.msra.mxu0 0.0
    %113 = vmatprep.subr.mxu0 0.0
    %114 = vmatpush1.msra.mxu0 0.0
    %115 = vmatprep.subr.mxu0 0.0
    %116 = vmatpush1.msra.mxu0 0.0
    %117 = vmatprep.subr.mxu0 0.0
    %118 = vmatpush1.msra.mxu0 0.0
    %119 = vmatprep.subr.mxu0 0.0
    %120 = vmatpush1.msra.mxu0 0.0
    %121 = vmatprep.subr.mxu0 0.0
    %122 = vmatpush1.msra.mxu0 0.0
    %123 = vmatprep.subr.mxu0 0.0
    %124 = vmatpush1.msra.mxu0 0.0
    %125 = vmatprep.subr.mxu0 0.0
    %126 = vmatpush1.msra.mxu0 0.0
    %127 = vmatprep.subr.mxu0 0.0
    %128 = vmatpush1.msra.mxu0 0.0
    %129 = vmatprep.subr.mxu0 0.0
    %130 = vmatpush1.msra.mxu0 0.0
    %131 = vmatprep.subr.mxu0 0.0
    %132 = vmatpush1.msra.mxu0 0.0
    %133 = vmatprep.subr.mxu0 0.0
    %134 = vmatpush1.msra.mxu0 0.0
    %135 = vmatprep.subr.mxu0 0.0
    %136 = vmatpush1.msra.mxu0 0.0
    %137 = vmatprep.subr.mxu0 0.0
    %138 = vmatpush1.msra.mxu0 0.0
    %139 = vmatprep.subr.mxu0 0.0
    %140 = vmatpush1.msra.mxu0 0.0
    %141 = vmatprep.subr.mxu0 0.0
    %142 = vmatpush1.msra.mxu0 0.0
    %143 = vmatprep.subr.mxu0 0.0
    %144 = vmatpush1.msra.mxu0 0.0
    %145 = vmatprep.subr.mxu0 0.0
    %146 = vmatpush1.msra.mxu0 0.0
    %147 = vmatprep.subr.mxu0 0.0
    %148 = vmatpush1.msra.mxu0 0.0
    %149 = vmatprep.subr.mxu0 0.0
    %150 = vmatpush1.msra.mxu0 0.0
    %151 = vmatprep.subr.mxu0 0.0
    %152 = vmatpush1.msra.mxu0 0.0
    %153 = vmatprep.subr.mxu0 0.0
    %154 = vmatpush1.msra.mxu0 0.0
    %155 = vmatprep.subr.mxu0 0.0
    %156 = vmatpush1.msra.mxu0 0.0
    %157 = vmatprep.subr.mxu0 0.0
    %158 = vmatpush1.msra.mxu0 0.0
    %159 = vmatprep.subr.mxu0 0.0
    %160 = vmatpush1.msra.mxu0 0.0
    %161 = vmatprep.subr.mxu0 0.0
    %162 = vmatpush1.msra.mxu0 0.0
    %163 = vmatprep.subr.mxu0 0.0
    %164 = vmatpush1.msra.mxu0 0.0
    %165 = vmatprep.subr.mxu0 0.0
    %166 = vmatpush1.msra.mxu0 0.0
    %167 = vmatprep.subr.mxu0 0.0
    %168 = vmatpush1.msra.mxu0 0.0
    %169 = vmatprep.subr.mxu0 0.0
    %170 = vmatpush1.msra.mxu0 0.0
    %171 = vmatprep.mubr.f32.mxu0 0.0
    %172 = vmatmul.mubr.f32.gmra.mrb[0].mxu0 %v96
    %v173 = vpop.f32.mrb[0].mxu0
    %v174 = vadd.f32 0.0, %v173
    %v175 = vpop.f32.mrb[0].mxu0
    %176 = vmatprep.mubr.f32.mxu0 0.0
    %177 = vmatmul.mubr.f32.gmra.mrb[0].mxu0 %v99
    %v178 = vpop.f32.mrb[0].mxu0
    %v179 = vadd.f32 0.0, %v178
    %v180 = vpop.f32.mrb[0].mxu0
    %181 = vmatprep.mubr.f32.mxu0 0.0
    %182 = vmatmul.mubr.f32.gmra.mrb[0].mxu0 %v102
    %v183 = vpop.f32.mrb[0].mxu0
    %v184 = vadd.f32 0.0, %v183
    %v185 = vpop.f32.mrb[0].mxu0
    %186 = vmatprep.mubr.f32.mxu0 0.0
    %187 = vmatmul.mubr.f32.gmra.mrb[0].mxu0 %v105
    %v188 = vpop.f32.mrb[0].mxu0
    %v189 = vadd.f32 0.0, %v188
    %v190 = vpop.f32.mrb[0].mxu0
    %191 = vdwg.mxu0
    %v193 = vsel %vm94, %v86, 0
    %v196 = vsel %vm94, %v87, 0
    %v199 = vsel %vm94, %v88, 0
    %v202 = vsel %vm94, %v89, 0
    %204 = vmatprep.subr.mxu0 0.0
    %205 = vmatpush1.msra.mxu0 %v71
    %206 = vmatprep.subr.mxu0 0.0
    %207 = vmatpush1.msra.mxu0 %v72
    %208 = vmatprep.subr.mxu0 0.0
    %209 = vmatpush1.msra.mxu0 0.0
    %210 = vmatprep.subr.mxu0 0.0
    %211 = vmatpush1.msra.mxu0 0.0
    %212 = vmatprep.subr.mxu0 0.0
    %213 = vmatpush1.msra.mxu0 0.0
    %214 = vmatprep.subr.mxu0 0.0
    %215 = vmatpush1.msra.mxu0 0.0
    %216 = vmatprep.subr.mxu0 0.0
    %217 = vmatpush1.msra.mxu0 0.0
    %218 = vmatprep.subr.mxu0 0.0
    %219 = vmatpush1.msra.mxu0 0.0
    %220 = vmatprep.subr.mxu0 0.0
    %221 = vmatpush1.msra.mxu0 0.0
    %222 = vmatprep.subr.mxu0 0.0
    %223 = vmatpush1.msra.mxu0 0.0
    %224 = vmatprep.subr.mxu0 0.0
    %225 = vmatpush1.msra.mxu0 0.0
    %226 = vmatprep.subr.mxu0 0.0
    %227 = vmatpush1.msra.mxu0 0.0
    %228 = vmatprep.subr.mxu0 0.0
    %229 = vmatpush1.msra.mxu0 0.0
    %230 = vmatprep.subr.mxu0 0.0
    %231 = vmatpush1.msra.mxu0 0.0
    %232 = vmatprep.subr.mxu0 0.0
    %233 = vmatpush1.msra.mxu0 0.0
    %234 = vmatprep.subr.mxu0 0.0
    %235 = vmatpush1.msra.mxu0 0.0
    %236 = vmatprep.subr.mxu0 0.0
    %237 = vmatpush1.msra.mxu0 0.0
    %238 = vmatprep.subr.mxu0 0.0
    %239 = vmatpush1.msra.mxu0 0.0
    %240 = vmatprep.subr.mxu0 0.0
    %241 = vmatpush1.msra.mxu0 0.0
    %242 = vmatprep.subr.mxu0 0.0
    %243 = vmatpush1.msra.mxu0 0.0
    %244 = vmatprep.subr.mxu0 0.0
    %245 = vmatpush1.msra.mxu0 0.0
    %246 = vmatprep.subr.mxu0 0.0
    %247 = vmatpush1.msra.mxu0 0.0
    %248 = vmatprep.subr.mxu0 0.0
    %249 = vmatpush1.msra.mxu0 0.0
    %250 = vmatprep.subr.mxu0 0.0
    %251 = vmatpush1.msra.mxu0 0.0
    %252 = vmatprep.subr.mxu0 0.0
    %253 = vmatpush1.msra.mxu0 0.0
    %254 = vmatprep.subr.mxu0 0.0
    %255 = vmatpush1.msra.mxu0 0.0
    %256 = vmatprep.subr.mxu0 0.0
    %257 = vmatpush1.msra.mxu0 0.0
    %258 = vmatprep.subr.mxu0 0.0
    %259 = vmatpush1.msra.mxu0 0.0
    %260 = vmatprep.subr.mxu0 0.0
    %261 = vmatpush1.msra.mxu0 0.0
    %262 = vmatprep.subr.mxu0 0.0
    %263 = vmatpush1.msra.mxu0 0.0
    %264 = vmatprep.subr.mxu0 0.0
    %265 = vmatpush1.msra.mxu0 0.0
    %266 = vmatprep.subr.mxu0 0.0
    %267 = vmatpush1.msra.mxu0 0.0
    %268 = vmatprep.mubr.f32.mxu0 0.0
    %269 = vmatmul.mubr.f32.gmra.mrb[0].mxu0 %v193
    %v270 = vpop.f32.mrb[0].mxu0
    %v271 = vadd.f32 %v174, %v270
    %v272 = vpop.f32.mrb[0].mxu0
    %273 = vmatprep.mubr.f32.mxu0 0.0
    %274 = vmatmul.mubr.f32.gmra.mrb[0].mxu0 %v196
    %v275 = vpop.f32.mrb[0].mxu0
    %v276 = vadd.f32 %v179, %v275
    %v277 = vpop.f32.mrb[0].mxu0
    %278 = vmatprep.mubr.f32.mxu0 0.0
    %279 = vmatmul.mubr.f32.gmra.mrb[0].mxu0 %v199
    %v280 = vpop.f32.mrb[0].mxu0
    %v281 = vadd.f32 %v184, %v280
    %v282 = vpop.f32.mrb[0].mxu0
    %283 = vmatprep.mubr.f32.mxu0 0.0
    %284 = vmatmul.mubr.f32.gmra.mrb[0].mxu0 %v202
    %v285 = vpop.f32.mrb[0].mxu0
    %v286 = vadd.f32 %v189, %v285
    %v287 = vpop.f32.mrb[0].mxu0
    %288 = vdwg.mxu0
    %v289 = vld [vmem:[%s6] sm:$0xff]
    %v290 = vld [vmem:[%s6 + $0x8] sm:$0xff]
    %v291 = vld [vmem:[%s6 + $0x10] sm:$0xff]
    %v292 = vld [vmem:[%s6 + $0x18] sm:$0xff]
    %294 = vset.pattern.permute.xlu0 0
    %295 = vperm.xlu0 %294, %v289
    %v296 = vpop.permute.xlu0 %295
    %299 = vset.pattern.permute.xlu0 0
    %300 = vperm.xlu0 %299, %v290
    %v301 = vpop.permute.xlu0 %300
    %304 = vset.pattern.permute.xlu0 0
    %305 = vperm.xlu0 %304, %v291
    %v306 = vpop.permute.xlu0 %305
    %309 = vset.pattern.permute.xlu0 0
    %310 = vperm.xlu0 %309, %v292
    %v311 = vpop.permute.xlu0 %310
    %v313 = vadd.f32 %v271, %v296
    %v314 = vadd.f32 %v276, %v301
    %v315 = vadd.f32 %v281, %v306
    %v316 = vadd.f32 %v286, %v311
    %v317 = vld [vmem:[%s7] sm:$0xff]
    %v318 = vld [vmem:[%s7 + $0x8] sm:$0xff]
    %v319 = vld [vmem:[%s8] sm:$0xff]
    %v320 = vld [vmem:[%s8 + $0x8] sm:$0xff]
    %322 = vset.pattern.permute.xlu0 0
    %323 = vperm.xlu0 %322, %v319
    %v324 = vpop.permute.xlu0 %323
    %327 = vset.pattern.permute.xlu0 0
    %328 = vperm.xlu0 %327, %v320
    %v329 = vpop.permute.xlu0 %328
    %vm331 = vcmask 261120
    %v333 = vsel %vm331, %v317, 0
    %v336 = vsel %vm331, %v318, 0
    %338 = vmatprep.subr.mxu0 0.0
    %339 = vmatpush1.msra.mxu0 %v313
    %340 = vmatprep.subr.mxu0 0.0
    %341 = vmatpush1.msra.mxu0 %v314
    %342 = vmatprep.subr.mxu0 0.0
    %343 = vmatpush1.msra.mxu0 %v315
    %344 = vmatprep.subr.mxu0 0.0
    %345 = vmatpush1.msra.mxu0 %v316
    %346 = vmatprep.subr.mxu0 0.0
    %347 = vmatpush1.msra.mxu0 0.0
    %348 = vmatprep.subr.mxu0 0.0
    %349 = vmatpush1.msra.mxu0 0.0
    %350 = vmatprep.subr.mxu0 0.0
    %351 = vmatpush1.msra.mxu0 0.0
    %352 = vmatprep.subr.mxu0 0.0
    %353 = vmatpush1.msra.mxu0 0.0
    %354 = vmatprep.subr.mxu0 0.0
    %355 = vmatpush1.msra.mxu0 0.0
    %356 = vmatprep.subr.mxu0 0.0
    %357 = vmatpush1.msra.mxu0 0.0
    %358 = vmatprep.subr.mxu0 0.0
    %359 = vmatpush1.msra.mxu0 0.0
    %360 = vmatprep.subr.mxu0 0.0
    %361 = vmatpush1.msra.mxu0 0.0
    %362 = vmatprep.subr.mxu0 0.0
    %363 = vmatpush1.msra.mxu0 0.0
    %364 = vmatprep.subr.mxu0 0.0
    %365 = vmatpush1.msra.mxu0 0.0
    %366 = vmatprep.subr.mxu0 0.0
    %367 = vmatpush1.msra.mxu0 0.0
    %368 = vmatprep.subr.mxu0 0.0
    %369 = vmatpush1.msra.mxu0 0.0
    %370 = vmatprep.subr.mxu0 0.0
    %371 = vmatpush1.msra.mxu0 0.0
    %372 = vmatprep.subr.mxu0 0.0
    %373 = vmatpush1.msra.mxu0 0.0
    %374 = vmatprep.subr.mxu0 0.0
    %375 = vmatpush1.msra.mxu0 0.0
    %376 = vmatprep.subr.mxu0 0.0
    %377 = vmatpush1.msra.mxu0 0.0
    %378 = vmatprep.subr.mxu0 0.0
    %379 = vmatpush1.msra.mxu0 0.0
    %380 = vmatprep.subr.mxu0 0.0
    %381 = vmatpush1.msra.mxu0 0.0
    %382 = vmatprep.subr.mxu0 0.0
    %383 = vmatpush1.msra.mxu0 0.0
    %384 = vmatprep.subr.mxu0 0.0
    %385 = vmatpush1.msra.mxu0 0.0
    %386 = vmatprep.subr.mxu0 0.0
    %387 = vmatpush1.msra.mxu0 0.0
    %388 = vmatprep.subr.mxu0 0.0
    %389 = vmatpush1.msra.mxu0 0.0
    %390 = vmatprep.subr.mxu0 0.0
    %391 = vmatpush1.msra.mxu0 0.0
    %392 = vmatprep.subr.mxu0 0.0
    %393 = vmatpush1.msra.mxu0 0.0
    %394 = vmatprep.subr.mxu0 0.0
    %395 = vmatpush1.msra.mxu0 0.0
    %396 = vmatprep.subr.mxu0 0.0
    %397 = vmatpush1.msra.mxu0 0.0
    %398 = vmatprep.subr.mxu0 0.0
    %399 = vmatpush1.msra.mxu0 0.0
    %400 = vmatprep.subr.mxu0 0.0
    %401 = vmatpush1.msra.mxu0 0.0
    %402 = vmatprep.mubr.f32.mxu0 0.0
    %403 = vmatmul.mubr.f32.gmra.mrb[0].mxu0 %v333
    %v404 = vpop.f32.mrb[0].mxu0
    %v405 = vadd.f32 %v324, %v404
    %v406 = vpop.f32.mrb[0].mxu0
    %407 = vmatprep.mubr.f32.mxu0 0.0
    %408 = vmatmul.mubr.f32.gmra.mrb[0].mxu0 %v336
    %v409 = vpop.f32.mrb[0].mxu0
    %v410 = vadd.f32 %v329, %v409
    %v411 = vpop.f32.mrb[0].mxu0
    %412 = vdwg.mxu0
    %v413 = vmax.f32 %v405, 0.0
    %v414 = vmax.f32 %v410, 0.0
    %v415 = vadd.f32 %v71, %v413
    %v416 = vadd.f32 %v72, %v414
    %417 = vst [vmem:[#allocation2] sm:$0xff] %v415
    %418 = vst [vmem:[#allocation2 + $0x8] sm:$0xff] %v416
    %419 = vst [vmem:[#allocation4] sm:$0xff] %v413
    %420 = vst [vmem:[#allocation4 + $0x8] sm:$0xff] %v414
    // Predicated region
    $region38: #{tpu_custom_call.1} parent=1 // pred_check
      _
    $region39: #{tpu_custom_call.1} parent=1 // pred_check_branch
      %422 = sbr.rel (0) target = $region41
    $region40: #{tpu_custom_call.1} parent=1 // pred_region
      %s424 = ssub.s32 256, 256
      %425 = vsyncadd [#allocation3], %s424
      %s426 = sshll.u32 [#allocation2], 4
      %s427 = int_to_ptr.vmem [resolvable:$true] %s426
      %432 = dma.vmem_to_hbm [thread:$0]  %s427, 256, %s9, [#allocation3], 128, 128, 8
    $region41: #{tpu_custom_call.1} parent=1 // pred_fallthru
      _
    // Predicated region
    $region42: #{tpu_custom_call.1} parent=1 // pred_check
      _
    $region43: #{tpu_custom_call.1} parent=1 // pred_check_branch
      %434 = sbr.rel (0) target = $region45
    $region44: #{tpu_custom_call.1} parent=1 // pred_region
      %s436 = ssub.s32 256, 256
      %437 = vsyncadd [#allocation5], %s436
      %s438 = sshll.u32 [#allocation4], 4
      %s439 = int_to_ptr.vmem [resolvable:$true] %s438
      %444 = dma.vmem_to_hbm [thread:$0]  %s439, 256, %s10, [#allocation5], 128, 128, 8
    $region45: #{tpu_custom_call.1} parent=1 // pred_fallthru
      _
    // Predicated region
    $region46: #{tpu_custom_call.1} parent=1 // pred_check
      _
    $region47: #{tpu_custom_call.1} parent=1 // pred_check_branch
      %446 = sbr.rel (0) target = $region49
    $region48: #{tpu_custom_call.1} parent=1 // pred_region
      %447 = dma.done [#allocation3], 256
    $region49: #{tpu_custom_call.1} parent=1 // pred_fallthru
      _
    // Predicated region
    $region50: #{tpu_custom_call.1} parent=1 // pred_check
      _
    $region51: #{tpu_custom_call.1} parent=1 // pred_check_branch
      %449 = sbr.rel (0) target = $region53
    $region52: #{tpu_custom_call.1} parent=1 // pred_region
      %450 = dma.done [#allocation5], 256
    $region53: #{tpu_custom_call.1} parent=1 // pred_fallthru
      _
    %451 = vsyncpa [#allocation3], 1
    %452 = vsyncpa [#allocation5], 1

</llo_original>
